<compile_context>
chip_gen: v7x
topology: tpu7x:2x2x1
jax: 0.10.0
libtpu: 0.0.40
codegen_flags: <defaults>
</compile_context>

<pallas_src>
import functools

import jax
import jax.numpy as jnp
import numpy as np
from jax.experimental import pallas as pl
from jax.experimental.pallas import tpu as pltpu


# ----------------------------- Pallas kernel --------------------------------

def _lane_roll(x, shift):
    """Roll along the last (lane) axis, jnp.roll semantics: out[g] = x[(g-shift) % n]."""
    n = x.shape[-1]
    shift = shift % n
    if shift == 0:
        return x
    if n % 128 == 0:
        # vreg-aligned lane width -> cheap XLU lane rotation (separate VLIW slot)
        return pltpu.roll(x, shift=shift, axis=x.ndim - 1)
    # unaligned small widths: slice+concat shift (VMEM copies, hidden under the
    # HBM DMA for this memory-bound kernel)
    return jnp.concatenate([x[..., n - shift:], x[..., :n - shift]], axis=-1)


def _rope_kernel(q_ref, k_ref, cos_ref, sin_ref, qo_ref, ko_ref, *, nheads, head_dim):
    """out = x * cos + half_swap(x) * sin_signed on a lane-dense (tile, H*D) block.

    cos_ref : (tile, D) plain cos values (identical halves, as in the RoFormer cache).
    sin_ref : (tile, D) sign-folded sin = [-sin, +sin], so per head chunk:
        out[:, :half] = x1*cos - x2*sin
        out[:, half:] = x2*cos + x1*sin
    """
    half = head_dim // 2
    hd = nheads * head_dim
    rows = q_ref.shape[0]

    # Replicate the D-wide coefficients across heads once per grid step; reused
    # for both q and k (coefficients stay D-wide in HBM -> no traffic blow-up).
    def rep(c):
        return c if nheads == 1 else jnp.concatenate([c] * nheads, axis=-1)

    cos = rep(cos_ref[...])
    sin = rep(sin_ref[...])

    # within-head half swap == the data movement of rotate_half
    if nheads == 1:
        def swap(x):
            # full-width roll by half IS the half swap when there is one head
            return _lane_roll(x, half)
    elif hd % 128 == 0:
        # lane-index mask selecting the first half of every head chunk;
        # computed once per grid step and reused for q and k.
        lane = jax.lax.broadcasted_iota(jnp.int32, (rows, hd), 1)
        first_half = (lane % head_dim) < half

        def swap(x):
            x_up = pltpu.roll(x, shift=hd - half, axis=1)   # x[(g + half) % hd]
            x_dn = pltpu.roll(x, shift=half, axis=1)        # x[(g - half) % hd]
            # select kills the cross-head wrap-around terms of the rolls
            return jnp.where(first_half, x_up, x_dn)
    else:
        # small / 128-unaligned folded widths: explicit per-head slice + concat
        def swap(x):
            parts = []
            for h in range(nheads):
                a = h * head_dim
                parts.append(x[:, a + half:a + head_dim])   # x2
                parts.append(x[:, a:a + half])               # x1
            return jnp.concatenate(parts, axis=-1)

    q = q_ref[...]
    k = k_ref[...]
    qo_ref[...] = q * cos + swap(q) * sin
    ko_ref[...] = k * cos + swap(k) * sin


# ----------------------------- Wrapper ---------------------------------------

def _choose_token_tile(T, HD, D, itemsize, requested=None,
                       budget_bytes=30 * 1024 * 1024):
    """Pick a token tile.

    Big enough that each grid step moves several MB of HBM data (amortizes the
    ~0.35us per-step overhead, which matters most on v7x's 3.2 TB/s HBM), small
    enough that double-buffered pipeline blocks PLUS the in-kernel temporaries
    (cos/sin head replications, roll intermediates, lane mask) stay within the
    budget -- v7x has only 64 MiB physical VMEM.
    """
    pack = 8 * max(1, 4 // itemsize)          # sublane packing: 8 f32, 16 bf16, 32 int8/fp8
    if requested is None:
        per_token = (
            2 * itemsize * (4 * HD + 2 * D)   # double-buffered q,k,qo,ko + 2 coeff streams
            + 4 * itemsize * HD               # cos/sin reps + roll/select temporaries
            + 4 * HD                          # int32 lane-index mask
        )
        tile = budget_bytes // max(per_token, 1)
    else:
        tile = int(requested)
    tile = min(max(tile, pack), 4096)
    tile = (tile // pack) * pack
    t_ceil = -(-T // pack) * pack             # don't allocate blocks past the data
    return max(pack, min(tile, t_ceil))


def apply_rotary_pallas(q, k, cos_tok, sin_tok, *, token_tile=None):
    """q, k: (T, H, D);  cos_tok: (T, D) cos;  sin_tok: (T, D) sign-folded sin."""
    T, H, D = q.shape
    assert k.shape == (T, H, D)
    assert cos_tok.shape == (T, D) and sin_tok.shape == (T, D)
    assert D % 2 == 0, "headdim must be even for rotary embedding"
    HD = H * D
    dtype = q.dtype
    itemsize = jnp.dtype(dtype).itemsize

    # lane-dense layout: fold heads into the last (lane) dim (free reshape of
    # contiguous trailing dims) -> unmasked stores whenever H*D >= 128.
    q2 = q.reshape(T, HD)
    k2 = k.reshape(T, HD)
    cos_tok = cos_tok.astype(dtype)
    sin_tok = sin_tok.astype(dtype)

    tile = _choose_token_tile(T, HD, D, itemsize, token_tile)
    grid = (pl.cdiv(T, tile),)      # partial edge block is masked by Pallas --
                                    # no jnp.pad / [:T] HBM round trips.

    qk_spec = pl.BlockSpec((tile, HD), lambda i: (i, 0))
    cf_spec = pl.BlockSpec((tile, D), lambda i: (i, 0))

    kernel = functools.partial(_rope_kernel, nheads=H, head_dim=D)
    cost = pl.CostEstimate(
        flops=6 * T * HD,                                   # 1 fma + 1 mul per elem, q and k
        transcendentals=0,
        bytes_accessed=(4 * HD + 2 * D) * T * itemsize,
    )

    # TODO(synk): with donated inputs, input_output_aliases={0: 0, 1: 1} would let
    # the outputs reuse the q/k HBM buffers (capacity, not bandwidth); skipped
    # here because this script reuses q/k after the call.
    qo2, ko2 = pl.pallas_call(
        kernel,
        out_shape=(jax.ShapeDtypeStruct((T, HD), dtype),
                   jax.ShapeDtypeStruct((T, HD), dtype)),
        grid=grid,
        in_specs=[qk_spec, qk_spec, cf_spec, cf_spec],
        out_specs=(qk_spec, qk_spec),
        compiler_params=pltpu.CompilerParams(
            dimension_semantics=("parallel",),      # token grid shards across TCs on v7x
            vmem_limit_bytes=48 * 1024 * 1024,      # < v7x's 64 MiB physical VMEM
        ),
        cost_estimate=cost,
    )(q2, k2, cos_tok, sin_tok)

    return qo2.reshape(T, H, D), ko2.reshape(T, H, D)


# ----------------------------- Module wrapper --------------------------------

class RotaryEmbedding:
    """JAX/Pallas port of esme/rotary.py::RotaryEmbedding (forward only)."""

    def __init__(self, dim: int, base: float = 10000.0, pos_idx_in_fp32: bool = True):
        self.dim = dim
        self.base = float(base)
        self.pos_idx_in_fp32 = pos_idx_in_fp32
        self.inv_freq = self._compute_inv_freq()

    def _compute_inv_freq(self):
        return 1.0 / self.base ** (
            jnp.arange(0, self.dim, 2, dtype=jnp.float32) / self.dim
        )

    def _cos_sin_cache(self, seqlen: int, dtype):
        """Returns the (seqlen, dim) cos cache and the SIGN-FOLDED sin cache
        ([-sin, +sin]).  Folding rotate_half's sign once on the small cache lets
        the kernel run pure fma + lane swap with only two coefficient streams."""
        if self.pos_idx_in_fp32:
            t = jnp.arange(seqlen, dtype=jnp.float32)
            inv_freq = self.inv_freq.astype(jnp.float32)
        else:
            t = jnp.arange(seqlen, dtype=self.inv_freq.dtype)
            inv_freq = self.inv_freq
        freqs = jnp.outer(t, inv_freq)                       # (seqlen, dim/2)
        cos = jnp.cos(freqs)
        sin = jnp.sin(freqs)
        cos_full = jnp.concatenate([cos, cos], axis=-1)      # == cos(cat(freqs, freqs))
        sin_signed = jnp.concatenate([-sin, sin], axis=-1)   # rotate_half sign folded in
        return cos_full.astype(dtype), sin_signed.astype(dtype)

    @staticmethod
    def _culen_indices(cu_lens, total):
        positions = jnp.arange(total, dtype=jnp.int32)
        ids = jnp.searchsorted(cu_lens, positions, side="right") - 1
        starts = cu_lens[:-1]
        return positions - starts[ids]

    def __call__(self, q, k, cu_lens, max_len: int, *, token_tile=None):
        cos, sin_signed = self._cos_sin_cache(max_len, q.dtype)   # (max_len, dim)
        T = q.shape[0]
        idx = self._culen_indices(cu_lens, T)                     # (T,)
        # TODO(synk): for small nheads the two (T, dim) coefficient streams + this
        # gather could be removed entirely by streaming the (T,) positions and
        # computing cos/sin on the (idle) EUP inside the kernel.
        return apply_rotary_pallas(q, k, cos[idx], sin_signed[idx],
                                   token_tile=token_tile)


# ----------------------------- Reference (pure JAX) ---------------------------

def _rotate_half_ref(x):
    d = x.shape[-1] // 2
    return jnp.concatenate([-x[..., d:], x[..., :d]], axis=-1)


def _cos_sin_ref(seqlen, dim, base, dtype):
    inv_freq = 1.0 / base ** (jnp.arange(0, dim, 2, dtype=jnp.float32) / dim)
    t = jnp.arange(seqlen, dtype=jnp.float32)
    freqs = jnp.outer(t, inv_freq)
    emb = jnp.concatenate([freqs, freqs], axis=-1)
    return jnp.cos(emb).astype(dtype), jnp.sin(emb).astype(dtype)


def _apply_rotary_ref(x, cos_tok, sin_tok):
    return x * cos_tok[:, None, :] + _rotate_half_ref(x) * sin_tok[:, None, :]


# ----------------------------- Main ------------------------------------------

if __name__ == "__main__":
    def run_case(name, nheads, headdim, cu_list, max_len, token_tile=None,
                 dtype=jnp.float32, atol=1e-5):
        key = jax.random.PRNGKey(0)
        cu_lens = jnp.array(cu_list, dtype=jnp.int32)
        total = int(cu_list[-1])
        kq, kk = jax.random.split(key)
        q = jax.random.normal(kq, (total, nheads, headdim), dtype=dtype)
        k = jax.random.normal(kk, (total, nheads, headdim), dtype=dtype)

        rope = RotaryEmbedding(dim=headdim)
        q_r, k_r = rope(q, k, cu_lens, max_len, token_tile=token_tile)
        q_r, k_r = jax.block_until_ready((q_r, k_r))

        cos, sin = _cos_sin_ref(max_len, headdim, 10000.0, dtype)
        idx = RotaryEmbedding._culen_indices(cu_lens, total)
        q_ref = _apply_rotary_ref(q, cos[idx], sin[idx])
        k_ref = _apply_rotary_ref(k, cos[idx], sin[idx])
        assert np.allclose(np.asarray(q_r), np.asarray(q_ref), atol=atol), name
        assert np.allclose(np.asarray(k_r), np.asarray(k_ref), atol=atol), name

    # Small case (H*D = 16 < 128 -> per-head slice+concat swap path), single step.
    run_case("small", nheads=2, headdim=8, cu_list=[0, 6, 16], max_len=10)
    # Lane-aligned case (H*D = 128 -> masked pltpu.roll path), multi-step grid
    # with a partial edge block (T=300, tile=128 -> grid of 3, last block masked).
    run_case("aligned_partial", nheads=4, headdim=32, cu_list=[0, 128, 300],
             max_len=172, token_tile=128)
    # Single-head case (H=1, D=128 -> plain XLU roll, no mask/select needed).
    run_case("single_head", nheads=1, headdim=128, cu_list=[0, 40, 100], max_len=60)

    print("KERNEL_OK")
</pallas_src>

<mosaic_0001>
module attributes {stable_mosaic.version = 11 : i64} {
  func.func @_rope_kernel(%arg0: i32, %arg1: memref<16x16xf32, #tpu.memory_space<vmem>>, %arg2: memref<16x16xf32, #tpu.memory_space<vmem>>, %arg3: memref<16x8xf32, #tpu.memory_space<vmem>>, %arg4: memref<16x8xf32, #tpu.memory_space<vmem>>, %arg5: memref<16x16xf32, #tpu.memory_space<vmem>>, %arg6: memref<16x16xf32, #tpu.memory_space<vmem>>) attributes {dimension_semantics = [#tpu.dimension_semantics<parallel>], iteration_bounds = array<i64: 1>, scalar_prefetch = 0 : i64, scratch_operands = 0 : i64, tpu.core_type = #tpu.core_type<tc>, window_params = [{transform_indices = @transform_0, window_bounds = array<i64: 16, 16>}, {transform_indices = @transform_1, window_bounds = array<i64: 16, 16>}, {transform_indices = @transform_2, window_bounds = array<i64: 16, 8>}, {transform_indices = @transform_3, window_bounds = array<i64: 16, 8>}, {transform_indices = @transform_4, window_bounds = array<i64: 16, 16>}, {transform_indices = @transform_5, window_bounds = array<i64: 16, 16>}]} {
    %c0 = arith.constant 0 : index
    %c0_0 = arith.constant 0 : index
    %0 = vector.load %arg3[%c0, %c0_0] : memref<16x8xf32, #tpu.memory_space<vmem>>, vector<16x8xf32>
    %1 = tpu.concatenate %0, %0 in 1 : vector<16x8xf32>, vector<16x8xf32> -> vector<16x16xf32>
    %c0_1 = arith.constant 0 : index
    %c0_2 = arith.constant 0 : index
    %2 = vector.load %arg4[%c0_1, %c0_2] : memref<16x8xf32, #tpu.memory_space<vmem>>, vector<16x8xf32>
    %3 = tpu.concatenate %2, %2 in 1 : vector<16x8xf32>, vector<16x8xf32> -> vector<16x16xf32>
    %c0_3 = arith.constant 0 : index
    %c0_4 = arith.constant 0 : index
    %4 = vector.load %arg1[%c0_3, %c0_4] : memref<16x16xf32, #tpu.memory_space<vmem>>, vector<16x16xf32>
    %c0_5 = arith.constant 0 : index
    %c0_6 = arith.constant 0 : index
    %5 = vector.load %arg2[%c0_5, %c0_6] : memref<16x16xf32, #tpu.memory_space<vmem>>, vector<16x16xf32>
    %6 = arith.mulf %4, %1 : vector<16x16xf32>
    %7 = vector.extract_strided_slice %4 {offsets = [0, 4], sizes = [16, 4], strides = [1, 1]} : vector<16x16xf32> to vector<16x4xf32>
    %8 = vector.extract_strided_slice %4 {offsets = [0, 0], sizes = [16, 4], strides = [1, 1]} : vector<16x16xf32> to vector<16x4xf32>
    %9 = vector.extract_strided_slice %4 {offsets = [0, 12], sizes = [16, 4], strides = [1, 1]} : vector<16x16xf32> to vector<16x4xf32>
    %10 = vector.extract_strided_slice %4 {offsets = [0, 8], sizes = [16, 4], strides = [1, 1]} : vector<16x16xf32> to vector<16x4xf32>
    %11 = tpu.concatenate %7, %8, %9, %10 in 1 : vector<16x4xf32>, vector<16x4xf32>, vector<16x4xf32>, vector<16x4xf32> -> vector<16x16xf32>
    %12 = arith.mulf %11, %3 : vector<16x16xf32>
    %13 = arith.addf %6, %12 : vector<16x16xf32>
    %c0_7 = arith.constant 0 : index
    %c0_8 = arith.constant 0 : index
    %14 = vector.load %arg5[%c0_7, %c0_8] : memref<16x16xf32, #tpu.memory_space<vmem>>, vector<16x16xf32>
    tpu.vector_store %arg5[%c0_7, %c0_8], %13 {strides = array<i32>} : memref<16x16xf32, #tpu.memory_space<vmem>>, vector<16x16xf32>,
    %15 = arith.mulf %5, %1 : vector<16x16xf32>
    %16 = vector.extract_strided_slice %5 {offsets = [0, 4], sizes = [16, 4], strides = [1, 1]} : vector<16x16xf32> to vector<16x4xf32>
    %17 = vector.extract_strided_slice %5 {offsets = [0, 0], sizes = [16, 4], strides = [1, 1]} : vector<16x16xf32> to vector<16x4xf32>
    %18 = vector.extract_strided_slice %5 {offsets = [0, 12], sizes = [16, 4], strides = [1, 1]} : vector<16x16xf32> to vector<16x4xf32>
    %19 = vector.extract_strided_slice %5 {offsets = [0, 8], sizes = [16, 4], strides = [1, 1]} : vector<16x16xf32> to vector<16x4xf32>
    %20 = tpu.concatenate %16, %17, %18, %19 in 1 : vector<16x4xf32>, vector<16x4xf32>, vector<16x4xf32>, vector<16x4xf32> -> vector<16x16xf32>
    %21 = arith.mulf %20, %3 : vector<16x16xf32>
    %22 = arith.addf %15, %21 : vector<16x16xf32>
    %c0_9 = arith.constant 0 : index
    %c0_10 = arith.constant 0 : index
    %23 = vector.load %arg6[%c0_9, %c0_10] : memref<16x16xf32, #tpu.memory_space<vmem>>, vector<16x16xf32>
    tpu.vector_store %arg6[%c0_9, %c0_10], %22 {strides = array<i32>} : memref<16x16xf32, #tpu.memory_space<vmem>>, vector<16x16xf32>,
    return
  }
  func.func @transform_0(%arg0: i32) -> (i32, i32) {
    %c0_i32 = arith.constant 0 : i32
    %c0_i32_0 = arith.constant 0 : i32
    return %arg0, %c0_i32 : i32, i32
  }
  func.func @transform_1(%arg0: i32) -> (i32, i32) {
    %c0_i32 = arith.constant 0 : i32
    %c0_i32_0 = arith.constant 0 : i32
    return %arg0, %c0_i32 : i32, i32
  }
  func.func @transform_2(%arg0: i32) -> (i32, i32) {
    %c0_i32 = arith.constant 0 : i32
    %c0_i32_0 = arith.constant 0 : i32
    return %arg0, %c0_i32 : i32, i32
  }
  func.func @transform_3(%arg0: i32) -> (i32, i32) {
    %c0_i32 = arith.constant 0 : i32
    %c0_i32_0 = arith.constant 0 : i32
    return %arg0, %c0_i32 : i32, i32
  }
  func.func @transform_4(%arg0: i32) -> (i32, i32) {
    %c0_i32 = arith.constant 0 : i32
    %c0_i32_0 = arith.constant 0 : i32
    return %arg0, %c0_i32 : i32, i32
  }
  func.func @transform_5(%arg0: i32) -> (i32, i32) {
    %c0_i32 = arith.constant 0 : i32
    %c0_i32_0 = arith.constant 0 : i32
    return %arg0, %c0_i32 : i32, i32
  }
}

</mosaic_0001>

<llo_original>
// kernel: tpu_custom_call.1
$region0: #{tpu_custom_call.1}
  #allocation0 [shape = 'u32[]', space=smem, size = 0x4, offset = 0x4, fixed_abs, tag = 'smem constant byte address 0x4 - core index']
  #allocation1 [shape = 'u32[144,128]{1,0:T(1,128)}', space=vmem, size = 0x12000, scoped, tag = 'internal scratch']
  %s0 = inlined_call_operand.vmem [shape: f32[16,16], index: 0, kind: input, shape index: {}]
  %s1 = inlined_call_operand.vmem [shape: f32[16,16], index: 1, kind: input, shape index: {}]
  %s2 = inlined_call_operand.vmem [shape: f32[16,8], index: 2, kind: input, shape index: {}]
  %s3 = inlined_call_operand.vmem [shape: f32[16,8], index: 3, kind: input, shape index: {}]
  %s4 = inlined_call_operand.hbm [shape: f32[16,16], index: 4, kind: output, shape index: {0}]
  %s5 = inlined_call_operand.hbm [shape: f32[16,16], index: 5, kind: output, shape index: {1}]
  %6 = xla_tuple %s4, %s5
  %s7 = sld [smem:[#allocation0]]
  $region34: #{tpu_custom_call.1} parent=0
    _
  %s9 = ssub.s32 1, %s7
  %s10 = scalar_select 0, %s9, %s7
  $region1: #{tpu_custom_call.1} parent=0
    #allocation2 [shape = 'u8[8192]{0}', space=vmem, size = 0x2000, scoped, tag = 'output window, operand 0, single buffered']
    #allocation3 [shape = 's32[1]{0}', space=sflag, size = 0x4, scoped, tag = 'scoped memory for tpu_custom_call.1']
    #allocation4 [shape = 'u8[8192]{0}', space=vmem, size = 0x2000, scoped, tag = 'output window, operand 1, single buffered']
    #allocation5 [shape = 's32[1]{0}', space=sflag, size = 0x4, scoped, tag = 'scoped memory for tpu_custom_call.1']
    %11 = vsyncpa [#allocation3], 0
    %12 = vsyncpa [#allocation5], 0
    // Predicated region
    $region2: #{tpu_custom_call.1} parent=1 // pred_check
      _
    $region3: #{tpu_custom_call.1} parent=1 // pred_check_branch
      %14 = sbr.rel (0) target = $region5
    $region4: #{tpu_custom_call.1} parent=1 // pred_region
      _
    $region5: #{tpu_custom_call.1} parent=1 // pred_fallthru
      _
    // Predicated region
    $region6: #{tpu_custom_call.1} parent=1 // pred_check
      _
    $region7: #{tpu_custom_call.1} parent=1 // pred_check_branch
      %16 = sbr.rel (0) target = $region9
    $region8: #{tpu_custom_call.1} parent=1 // pred_region
      _
    $region9: #{tpu_custom_call.1} parent=1 // pred_fallthru
      _
    // Predicated region
    $region10: #{tpu_custom_call.1} parent=1 // pred_check
      _
    $region11: #{tpu_custom_call.1} parent=1 // pred_check_branch
      %18 = sbr.rel (0) target = $region13
    $region12: #{tpu_custom_call.1} parent=1 // pred_region
      _
    $region13: #{tpu_custom_call.1} parent=1 // pred_fallthru
      _
    // Predicated region
    $region14: #{tpu_custom_call.1} parent=1 // pred_check
      _
    $region15: #{tpu_custom_call.1} parent=1 // pred_check_branch
      %20 = sbr.rel (0) target = $region17
    $region16: #{tpu_custom_call.1} parent=1 // pred_region
      _
    $region17: #{tpu_custom_call.1} parent=1 // pred_fallthru
      _
    %v21 = vld [vmem:[%s2] sm:$0xff]
    %v22 = vld [vmem:[%s2 + $0x8] sm:$0xff]
    %25 = vrot.lane.b32.xlu0 %v21, 8
    %v26 = vpop.permute.xlu0 %25
    %27 = vrot.lane.b32.xlu0 %v22, 8
    %v28 = vpop.permute.xlu0 %27
    %vm31 = vcmask 64512
    %v32 = vsel %vm31, %v21, %v26
    %v33 = vsel %vm31, %v22, %v28
    %v34 = vld [vmem:[%s3] sm:$0xff]
    %v35 = vld [vmem:[%s3 + $0x8] sm:$0xff]
    %38 = vrot.lane.b32.xlu0 %v34, 8
    %v39 = vpop.permute.xlu0 %38
    %40 = vrot.lane.b32.xlu0 %v35, 8
    %v41 = vpop.permute.xlu0 %40
    %v44 = vsel %vm31, %v34, %v39
    %v45 = vsel %vm31, %v35, %v41
    %v46 = vld [vmem:[%s0] sm:$0xff]
    %v47 = vld [vmem:[%s0 + $0x8] sm:$0xff]
    %v48 = vld [vmem:[%s1] sm:$0xff]
    %v49 = vld [vmem:[%s1 + $0x8] sm:$0xff]
    %v50 = vmul.f32 %v46, %v32
    %v51 = vmul.f32 %v47, %v33
    %54 = vrot.lane.b32.xlu0 %v46, 124
    %v55 = vpop.permute.xlu0 %54
    %56 = vrot.lane.b32.xlu0 %v47, 124
    %v57 = vpop.permute.xlu0 %56
    %60 = vrot.lane.b32.xlu0 %v46, 4
    %v61 = vpop.permute.xlu0 %60
    %62 = vrot.lane.b32.xlu0 %v47, 4
    %v63 = vpop.permute.xlu0 %62
    %vm66 = vcmask 31744
    %v67 = vsel %vm66, %v55, %v61
    %v68 = vsel %vm66, %v57, %v63
    %v69 = vsel %vm31, %v67, %v55
    %v70 = vsel %vm31, %v68, %v57
    %vm71 = vcmask 97280
    %v72 = vsel %vm71, %v69, %v61
    %v73 = vsel %vm71, %v70, %v63
    %v74 = vmul.f32 %v72, %v44
    %v75 = vmul.f32 %v73, %v45
    %v76 = vadd.f32 %v50, %v74
    %v77 = vadd.f32 %v51, %v75
    %vm78 = vcmask 130048
    %79 = vst.msk [vmem:[#allocation2] sm:$0xff] %vm78, %v76
    %80 = vst.msk [vmem:[#allocation2 + $0x8] sm:$0xff] %vm78, %v77
    %v81 = vmul.f32 %v48, %v32
    %v82 = vmul.f32 %v49, %v33
    %85 = vrot.lane.b32.xlu0 %v48, 124
    %v86 = vpop.permute.xlu0 %85
    %87 = vrot.lane.b32.xlu0 %v49, 124
    %v88 = vpop.permute.xlu0 %87
    %91 = vrot.lane.b32.xlu0 %v48, 4
    %v92 = vpop.permute.xlu0 %91
    %93 = vrot.lane.b32.xlu0 %v49, 4
    %v94 = vpop.permute.xlu0 %93
    %v97 = vsel %vm66, %v86, %v92
    %v98 = vsel %vm66, %v88, %v94
    %v99 = vsel %vm31, %v97, %v86
    %v100 = vsel %vm31, %v98, %v88
    %v101 = vsel %vm71, %v99, %v92
    %v102 = vsel %vm71, %v100, %v94
    %v103 = vmul.f32 %v101, %v44
    %v104 = vmul.f32 %v102, %v45
    %v105 = vadd.f32 %v81, %v103
    %v106 = vadd.f32 %v82, %v104
    %107 = vst.msk [vmem:[#allocation4] sm:$0xff] %vm78, %v105
    %108 = vst.msk [vmem:[#allocation4 + $0x8] sm:$0xff] %vm78, %v106
    // Predicated region
    $region18: #{tpu_custom_call.1} parent=1 // pred_check
      _
    $region19: #{tpu_custom_call.1} parent=1 // pred_check_branch
      %110 = sbr.rel (0) target = $region21
    $region20: #{tpu_custom_call.1} parent=1 // pred_region
      %s112 = ssub.s32 256, 256
      %113 = vsyncadd [#allocation3], %s112
      %s114 = sshll.u32 [#allocation2], 4
      %s115 = int_to_ptr.vmem [resolvable:$true] %s114
      %120 = dma.vmem_to_hbm [thread:$0]  %s115, 256, %s4, [#allocation3], 128, 128, 8
    $region21: #{tpu_custom_call.1} parent=1 // pred_fallthru
      _
    // Predicated region
    $region22: #{tpu_custom_call.1} parent=1 // pred_check
      _
    $region23: #{tpu_custom_call.1} parent=1 // pred_check_branch
      %122 = sbr.rel (0) target = $region25
    $region24: #{tpu_custom_call.1} parent=1 // pred_region
      %s124 = ssub.s32 256, 256
      %125 = vsyncadd [#allocation5], %s124
      %s126 = sshll.u32 [#allocation4], 4
      %s127 = int_to_ptr.vmem [resolvable:$true] %s126
      %132 = dma.vmem_to_hbm [thread:$0]  %s127, 256, %s5, [#allocation5], 128, 128, 8
    $region25: #{tpu_custom_call.1} parent=1 // pred_fallthru
      _
    // Predicated region
    $region26: #{tpu_custom_call.1} parent=1 // pred_check
      _
    $region27: #{tpu_custom_call.1} parent=1 // pred_check_branch
      %134 = sbr.rel (0) target = $region29
    $region28: #{tpu_custom_call.1} parent=1 // pred_region
      %135 = dma.done [#allocation3], 256
    $region29: #{tpu_custom_call.1} parent=1 // pred_fallthru
      _
    // Predicated region
    $region30: #{tpu_custom_call.1} parent=1 // pred_check
      _
    $region31: #{tpu_custom_call.1} parent=1 // pred_check_branch
      %137 = sbr.rel (0) target = $region33
    $region32: #{tpu_custom_call.1} parent=1 // pred_region
      %138 = dma.done [#allocation5], 256
    $region33: #{tpu_custom_call.1} parent=1 // pred_fallthru
      _
    %139 = vsyncpa [#allocation3], 1
    %140 = vsyncpa [#allocation5], 1

</llo_original>
